<compile_context>
chip_gen: v6e
topology: v6e:2x2x1
jax: 0.10.0
libtpu: 0.0.40
codegen_flags: <defaults>
</compile_context>

<pallas_src>
import numpy as np
import jax
import jax.numpy as jnp
from jax.experimental import pallas as pl
from jax.experimental.pallas import tpu as pltpu

TAU = 0.1  # temperature of the synthetic contrastive criterion


# ----------------------------------------------------------------------------
# helpers
# ----------------------------------------------------------------------------
def _vmem_limit_bytes():
    cap = 64 * 1024 * 1024
    try:
        info = pltpu.get_tpu_info()
        cap = int(getattr(info, "vmem_capacity_bytes", cap))
    except Exception:
        pass
    return int(min(cap * 3 // 4, 96 * 1024 * 1024))


def _round_up(x, m):
    return -(-x // m) * m


def _largest_tile(total, pref, mult=8):
    """Largest multiple of `mult` dividing `total`, capped at `pref` (else total)."""
    best = 0
    t = mult
    limit = min(total, pref)
    while t <= limit:
        if total % t == 0:
            best = t
        t += mult
    return best if best > 0 else total


def _interp_matrix(out_size, in_size):
    """Row-stochastic matrix implementing 1-D bilinear interp, align_corners=True."""
    W = np.zeros((out_size, in_size), np.float32)
    if in_size == 1 or out_size == 1:
        W[:, 0] = 1.0
        return W
    scale = (in_size - 1) / (out_size - 1)
    src = np.arange(out_size, dtype=np.float64) * scale
    lo = np.clip(np.floor(src).astype(np.int64), 0, in_size - 2)
    frac = (src - lo).astype(np.float32)
    rows = np.arange(out_size)
    W[rows, lo] = 1.0 - frac
    W[rows, lo + 1] = frac
    return W


# ----------------------------------------------------------------------------
# Kernel A: fused bilinear upsample + segmentation CE partial sums.
#   grid = (B, H // TH); width interp is one wide matmul, height interp streams
#   per class through an online softmax (no full logit tensor is ever live).
# ----------------------------------------------------------------------------
def _make_seg_kernel(C, h_pad, TH):
    def kernel(pred_ref, wh_ref, wwt_ref, tgt_ref, part_ref):
        x = pred_ref[0]                                        # (C*h_pad, w) bf16
        t1 = jnp.dot(x, wwt_ref[...], preferred_element_type=jnp.float32)
        t1 = t1.astype(jnp.bfloat16)                           # (C*h_pad, W)
        wh = wh_ref[...]                                       # (TH, h_pad) bf16
        tgt = tgt_ref[0]                                       # (TH, W) int32

        # online softmax streaming over classes: running max, rescaled sum,
        # picked logit.  Only ~4 (TH, W) f32 buffers live at any time.
        z = jnp.dot(wh, t1[0:h_pad], preferred_element_type=jnp.float32)
        m = z
        ssum = jnp.ones_like(z)
        picked = jnp.where(tgt == 0, z, 0.0)
        for c in range(1, C):
            z = jnp.dot(wh, t1[c * h_pad:(c + 1) * h_pad],
                        preferred_element_type=jnp.float32)    # (TH, W)
            m_new = jnp.maximum(m, z)
            ssum = ssum * jnp.exp(m - m_new) + jnp.exp(z - m_new)
            picked = jnp.where(tgt == c, z, picked)
            m = m_new
        # TODO(synk): no ignore_index handling (plain CrossEntropyLoss semantics).
        nll = m + jnp.log(ssum) - picked                       # (TH, W)

        # fold TH rows into a lane-dense (8, W) partial-sum slab
        acc = nll[0:8, :]
        for r in range(1, TH // 8):
            acc = acc + nll[r * 8:(r + 1) * 8, :]
        part_ref[0, 0] = acc
    return kernel


# ----------------------------------------------------------------------------
# Kernel P: argmax of the upsampled logits only at the strided (::sh, ::sw)
# positions the contrastive branch consumes, pre-merged with the labels into
# anchor labels (label where prediction is correct, -1 otherwise).
# ----------------------------------------------------------------------------
def _make_argmax_ds_kernel(C, h_pad, he, we):
    def kernel(pred_ref, whds_ref, wwtds_ref, tgt_ref, lab_ref):
        x = pred_ref[0]                                        # (C*h_pad, w) bf16
        t = jnp.dot(x, wwtds_ref[...], preferred_element_type=jnp.float32)
        t = t.astype(jnp.bfloat16)                             # (C*h_pad, we)
        whds = whds_ref[...]                                   # (he, h_pad) bf16

        z = jnp.dot(whds, t[0:h_pad], preferred_element_type=jnp.float32)
        m = z
        amax = jnp.zeros((he, we), jnp.int32)
        for c in range(1, C):
            z = jnp.dot(whds, t[c * h_pad:(c + 1) * h_pad],
                        preferred_element_type=jnp.float32)
            amax = jnp.where(z > m, jnp.int32(c), amax)        # first-max tie-break
            m = jnp.maximum(m, z)

        tgt = tgt_ref[0]                                       # (he, we) int32
        lab_ref[0] = jnp.where(amax == tgt, tgt, jnp.int32(-1))
    return kernel


# ----------------------------------------------------------------------------
# Kernel B1: class-prototype accumulation, native (D, P) feature layout.
#   grid = (B, nP): batch "parallel" (per-batch accumulators), P "arbitrary".
# ----------------------------------------------------------------------------
def _make_proto_kernel(TP, C_pad):
    def kernel(feats_ref, lab_ref, proto_ref, cnt_ref):
        @pl.when(pl.program_id(1) == 0)
        def _init():
            proto_ref[...] = jnp.zeros_like(proto_ref)
            cnt_ref[...] = jnp.zeros_like(cnt_ref)

        f = feats_ref[0]                                       # (D, TP) bf16
        lab = lab_ref[0]                                       # (TP, 1) int32
        cls = jax.lax.broadcasted_iota(jnp.int32, (TP, C_pad), 1)
        oh = (cls == lab)                                      # (TP, C_pad) one-hot
        proto_ref[0] += jnp.dot(f, oh.astype(f.dtype),
                                preferred_element_type=jnp.float32)  # (D, C_pad)
        cnt_ref[0] += jnp.sum(oh.astype(jnp.float32), axis=0, keepdims=True)
    return kernel


# ----------------------------------------------------------------------------
# Kernel B2: masked InfoNCE NLL accumulation, logits computed as (C_pad, TP).
#   1/tau is folded into the bf16 prototypes; anchors come pre-merged into the
#   lane-dense label stream (-1 = not an anchor).
# ----------------------------------------------------------------------------
def _make_ctl_kernel(TP, C_pad, C):
    def kernel(feats_ref, lab_ref, pn_ref, nll_ref, cnt_ref):
        @pl.when(pl.program_id(1) == 0)
        def _init():
            nll_ref[...] = jnp.zeros_like(nll_ref)
            cnt_ref[...] = jnp.zeros_like(cnt_ref)

        f = feats_ref[0]                                       # (D, TP) bf16
        lab = lab_ref[0]                                       # (1, TP) int32
        f32f = f.astype(jnp.float32)
        inv_norm = jax.lax.rsqrt(jnp.sum(f32f * f32f, axis=0, keepdims=True) + 1e-8)
        logits = jnp.dot(pn_ref[...], f,
                         preferred_element_type=jnp.float32)   # (C_pad, TP)
        logits = logits * inv_norm                             # L2-normalize feats
        cls = jax.lax.broadcasted_iota(jnp.int32, (C_pad, TP), 0)
        logits = jnp.where(cls < C, logits, -1e30)             # mask padded classes

        m = jnp.max(logits, axis=0, keepdims=True)             # (1, TP)
        lse = m + jnp.log(jnp.sum(jnp.exp(logits - m), axis=0, keepdims=True))
        picked = jnp.sum(jnp.where(cls == lab, logits, 0.0), axis=0, keepdims=True)
        anchor = (lab >= 0).astype(jnp.float32)                # (1, TP)
        nll_ref[0] += jnp.sum((lse - picked) * anchor, axis=1, keepdims=True)
        cnt_ref[0] += jnp.sum(anchor, axis=1, keepdims=True)
    return kernel


# ----------------------------------------------------------------------------
# Glue
# ----------------------------------------------------------------------------
def contrastive_loss_forward(embed, pred, target, lmbd=1.0):
    B, C, h, w = pred.shape
    D, he, we = embed.shape[1], embed.shape[2], embed.shape[3]
    target = target[:, 0].astype(jnp.int32)                    # squeeze(1) -> (B,H,W)
    H, W = target.shape[1], target.shape[2]
    assert H % 8 == 0, "target height must be a multiple of 8"
    assert H % he == 0 and W % we == 0, "embed resolution must divide target resolution"
    sh, sw = H // he, W // we

    vmem_limit = _vmem_limit_bytes()

    # bilinear interp matrices (align_corners=True); pad h to a multiple of 16
    # so the (B, C*h_pad, w) view and in-kernel bf16 row slices are tile-aligned.
    h_pad = _round_up(h, 16)
    wh_np = _interp_matrix(H, h)                               # (H, h)
    wwt_np = _interp_matrix(W, w).T                            # (w, W)
    if h_pad != h:
        wh_np = np.pad(wh_np, ((0, 0), (0, h_pad - h)))
        pred = jnp.pad(pred, ((0, 0), (0, 0), (0, h_pad - h), (0, 0)))
    wh = jnp.asarray(wh_np, dtype=jnp.bfloat16)                # (H, h_pad)
    wwt = jnp.asarray(wwt_np, dtype=jnp.bfloat16)              # (w, W)
    wh_ds = jnp.asarray(wh_np[::sh], dtype=jnp.bfloat16)       # (he, h_pad)
    wwt_ds = jnp.asarray(wwt_np[:, ::sw], dtype=jnp.bfloat16)  # (w, we)

    # low-res logits as bf16 with (C, h_pad) pre-merged (contiguous -> free view)
    pred_r = pred.astype(jnp.bfloat16).reshape(B, C * h_pad, w)

    # ---- Kernel A: fused upsample + CE partial sums -------------------------
    fixed = C * h_pad * W * 6                    # width-interp result (f32 + bf16)
    per_row = W * 24                             # ~5 f32 (TH,W) slabs + int32 target
    avail = max(vmem_limit // 3 - fixed, 8 * per_row)
    th_budget = max(8, min(1024, (avail // per_row) // 8 * 8))
    TH = _largest_tile(H, th_budget)
    if B == 1 and TH == H and H >= 16:
        TH = _largest_tile(H, max(8, H // 2))    # keep >=2 grid steps for megacore
    nHt = H // TH

    part = pl.pallas_call(
        _make_seg_kernel(C, h_pad, TH),
        out_shape=jax.ShapeDtypeStruct((B, nHt, 8, W), jnp.float32),
        grid=(B, nHt),
        in_specs=[
            pl.BlockSpec((1, C * h_pad, w), lambda b, t: (b, 0, 0)),
            pl.BlockSpec((TH, h_pad), lambda b, t: (t, 0)),
            pl.BlockSpec((w, W), lambda b, t: (0, 0)),
            pl.BlockSpec((1, TH, W), lambda b, t: (b, t, 0)),
        ],
        out_specs=pl.BlockSpec((1, 1, 8, W), lambda b, t: (b, t, 0, 0)),
        compiler_params=pltpu.CompilerParams(
            dimension_semantics=("parallel", "parallel"),
            vmem_limit_bytes=vmem_limit,
        ),
    )(pred_r, wh, wwt, target)

    seg_loss = jnp.sum(part) / float(B * H * W)

    # ---- Kernel P: anchor labels at downsampled positions only --------------
    target_ds = target[:, ::sh, ::sw]                          # (B, he, we)
    lab_anchor = pl.pallas_call(
        _make_argmax_ds_kernel(C, h_pad, he, we),
        out_shape=jax.ShapeDtypeStruct((B, he, we), jnp.int32),
        grid=(B,),
        in_specs=[
            pl.BlockSpec((1, C * h_pad, w), lambda b: (b, 0, 0)),
            pl.BlockSpec((he, h_pad), lambda b: (0, 0)),
            pl.BlockSpec((w, we), lambda b: (0, 0)),
            pl.BlockSpec((1, he, we), lambda b: (b, 0, 0)),
        ],
        out_specs=pl.BlockSpec((1, he, we), lambda b: (b, 0, 0)),
        compiler_params=pltpu.CompilerParams(
            dimension_semantics=("parallel",),
            vmem_limit_bytes=vmem_limit,
        ),
    )(pred_r, wh_ds, wwt_ds, target_ds)

    # ---- contrastive branch --------------------------------------------------
    P = he * we
    C_pad = max(128, _round_up(C, 128))
    TP = _largest_tile(P, 4096, mult=128)                      # full P if not 128-divisible
    nP = P // TP

    feats = embed.astype(jnp.bfloat16).reshape(B, D, P)        # native layout (no transpose)
    lab_all = target_ds.reshape(B, P, 1)                       # sublane labels for B1
    lab_anc = lab_anchor.reshape(B, 1, P)                      # lane-dense anchor labels for B2

    proto_b, cnt_b = pl.pallas_call(
        _make_proto_kernel(TP, C_pad),
        out_shape=(
            jax.ShapeDtypeStruct((B, D, C_pad), jnp.float32),
            jax.ShapeDtypeStruct((B, 1, C_pad), jnp.float32),
        ),
        grid=(B, nP),
        in_specs=[
            pl.BlockSpec((1, D, TP), lambda b, p: (b, 0, p)),
            pl.BlockSpec((1, TP, 1), lambda b, p: (b, p, 0)),
        ],
        out_specs=(
            pl.BlockSpec((1, D, C_pad), lambda b, p: (b, 0, 0)),
            pl.BlockSpec((1, 1, C_pad), lambda b, p: (b, 0, 0)),
        ),
        compiler_params=pltpu.CompilerParams(
            dimension_semantics=("parallel", "arbitrary"),
            vmem_limit_bytes=vmem_limit,
        ),
    )(feats, lab_all)

    # tiny wrapper-side reduction / normalization; fold 1/tau before bf16 cast
    proto = jnp.sum(proto_b, axis=0)                           # (D, C_pad)
    cnt = jnp.sum(cnt_b, axis=0)                               # (1, C_pad)
    proto = proto / jnp.maximum(cnt, 1.0)
    pn = proto * jax.lax.rsqrt(jnp.sum(proto * proto, axis=0, keepdims=True) + 1e-8)
    pn_cd = (jnp.transpose(pn) * (1.0 / TAU)).astype(jnp.bfloat16)   # (C_pad, D)

    nll_b, acnt_b = pl.pallas_call(
        _make_ctl_kernel(TP, C_pad, C),
        out_shape=(
            jax.ShapeDtypeStruct((B, 1, 1), jnp.float32),
            jax.ShapeDtypeStruct((B, 1, 1), jnp.float32),
        ),
        grid=(B, nP),
        in_specs=[
            pl.BlockSpec((1, D, TP), lambda b, p: (b, 0, p)),
            pl.BlockSpec((1, 1, TP), lambda b, p: (b, 0, p)),
            pl.BlockSpec((C_pad, D), lambda b, p: (0, 0)),
        ],
        out_specs=(
            pl.BlockSpec((1, 1, 1), lambda b, p: (b, 0, 0)),
            pl.BlockSpec((1, 1, 1), lambda b, p: (b, 0, 0)),
        ),
        compiler_params=pltpu.CompilerParams(
            dimension_semantics=("parallel", "arbitrary"),
            vmem_limit_bytes=vmem_limit,
        ),
    )(feats, lab_anc, pn_cd)

    ctl_loss = jnp.sum(nll_b) / jnp.maximum(jnp.sum(acnt_b), 1.0)
    loss = seg_loss + lmbd * ctl_loss
    return {'loss': loss, 'seg_loss': seg_loss, 'ctl_loss': ctl_loss}


if __name__ == "__main__":
    key = jax.random.PRNGKey(0)
    k1, k2, k3 = jax.random.split(key, 3)
    B, C, D = 2, 4, 32
    h, w = 8, 8        # low-res prediction / embedding resolution
    H, W = 16, 16      # target (full) resolution

    embed = jax.random.normal(k1, (B, D, h, w), dtype=jnp.float32)
    pred = jax.random.normal(k2, (B, C, h, w), dtype=jnp.float32)
    target = jax.random.randint(k3, (B, 1, H, W), 0, C, dtype=jnp.int32)

    out = contrastive_loss_forward(embed, pred, target, lmbd=1.0)
    jax.block_until_ready(out)
    # TODO(synk): BCEWithLogitsLoss branch of forward() is not exercised since
    # seg_criterion was instantiated as CrossEntropyLoss.
    print("KERNEL_OK")
</pallas_src>

<mosaic_0001>
module attributes {stable_mosaic.version = 11 : i64} {
  func.func @kernel(%arg0: i32, %arg1: i32, %arg2: memref<1x64x8xbf16, #tpu.memory_space<vmem>>, %arg3: memref<16x16xbf16, #tpu.memory_space<vmem>>, %arg4: memref<8x16xbf16, #tpu.memory_space<vmem>>, %arg5: memref<1x16x16xi32, #tpu.memory_space<vmem>>, %arg6: memref<1x1x8x16xf32, #tpu.memory_space<vmem>>) attributes {dimension_semantics = [#tpu.dimension_semantics<parallel>, #tpu.dimension_semantics<parallel>], iteration_bounds = array<i64: 2, 1>, scalar_prefetch = 0 : i64, scratch_operands = 0 : i64, tpu.core_type = #tpu.core_type<tc>, window_params = [{transform_indices = @transform_0, window_bounds = array<i64: 1, 64, 8>}, {transform_indices = @transform_1, window_bounds = array<i64: 16, 16>}, {pipeline_mode = #tpu.pipeline_mode<synchronous>, transform_indices = @transform_2, window_bounds = array<i64: 8, 16>}, {transform_indices = @transform_3, window_bounds = array<i64: 1, 16, 16>}, {transform_indices = @transform_4, window_bounds = array<i64: 1, 1, 8, 16>}]} {
    %c0 = arith.constant 0 : index
    %c0_0 = arith.constant 0 : index
    %c0_1 = arith.constant 0 : index
    %0 = vector.load %arg2[%c0, %c0_0, %c0_1] : memref<1x64x8xbf16, #tpu.memory_space<vmem>>, vector<1x64x8xbf16>
    %1 = vector.shape_cast %0 : vector<1x64x8xbf16> to vector<64x8xbf16>
    %c0_2 = arith.constant 0 : index
    %c0_3 = arith.constant 0 : index
    %2 = vector.load %arg4[%c0_2, %c0_3] : memref<8x16xbf16, #tpu.memory_space<vmem>>, vector<8x16xbf16>
    %cst = arith.constant dense<0.000000e+00> : vector<64x16xf32>
    %3 = tpu.matmul %1, %2, %cst {dimension_numbers = #tpu.dot_dimension_numbers<[1], [0], [0], [1], [0, 0, 1, 1], [], []>} : vector<64x8xbf16>, vector<8x16xbf16>, vector<64x16xf32> -> vector<64x16xf32>
    %4 = arith.truncf %3 : vector<64x16xf32> to vector<64x16xbf16>
    %c0_4 = arith.constant 0 : index
    %c0_5 = arith.constant 0 : index
    %5 = vector.load %arg3[%c0_4, %c0_5] : memref<16x16xbf16, #tpu.memory_space<vmem>>, vector<16x16xbf16>
    %c0_6 = arith.constant 0 : index
    %c0_7 = arith.constant 0 : index
    %c0_8 = arith.constant 0 : index
    %6 = vector.load %arg5[%c0_6, %c0_7, %c0_8] : memref<1x16x16xi32, #tpu.memory_space<vmem>>, vector<1x16x16xi32>
    %7 = vector.shape_cast %6 : vector<1x16x16xi32> to vector<16x16xi32>
    %8 = vector.extract_strided_slice %4 {offsets = [0, 0], sizes = [16, 16], strides = [1, 1]} : vector<64x16xbf16> to vector<16x16xbf16>
    %cst_9 = arith.constant dense<0.000000e+00> : vector<16x16xf32>
    %9 = tpu.matmul %5, %8, %cst_9 {dimension_numbers = #tpu.dot_dimension_numbers<[1], [0], [0], [1], [0, 0, 1, 1], [], []>} : vector<16x16xbf16>, vector<16x16xbf16>, vector<16x16xf32> -> vector<16x16xf32>
    %cst_10 = arith.constant 1.000000e+00 : f32
    %10 = vector.broadcast %cst_10 : f32 to vector<16x16xf32>
    %c0_i32 = arith.constant 0 : i32
    %11 = vector.broadcast %c0_i32 : i32 to vector<16x16xi32>
    %12 = arith.cmpi eq, %7, %11 : vector<16x16xi32>
    %cst_11 = arith.constant 0.000000e+00 : f32
    %13 = vector.broadcast %cst_11 : f32 to vector<16x16xf32>
    %14 = arith.select %12, %9, %13 : vector<16x16xi1>, vector<16x16xf32>
    %15 = vector.extract_strided_slice %4 {offsets = [16, 0], sizes = [16, 16], strides = [1, 1]} : vector<64x16xbf16> to vector<16x16xbf16>
    %cst_12 = arith.constant dense<0.000000e+00> : vector<16x16xf32>
    %16 = tpu.matmul %5, %15, %cst_12 {dimension_numbers = #tpu.dot_dimension_numbers<[1], [0], [0], [1], [0, 0, 1, 1], [], []>} : vector<16x16xbf16>, vector<16x16xbf16>, vector<16x16xf32> -> vector<16x16xf32>
    %17 = arith.maximumf %9, %16 : vector<16x16xf32>
    %18 = arith.subf %9, %17 : vector<16x16xf32>
    %19 = math.exp %18 : vector<16x16xf32>
    %20 = arith.mulf %10, %19 : vector<16x16xf32>
    %21 = arith.subf %16, %17 : vector<16x16xf32>
    %22 = math.exp %21 : vector<16x16xf32>
    %23 = arith.addf %20, %22 : vector<16x16xf32>
    %c1_i32 = arith.constant 1 : i32
    %24 = vector.broadcast %c1_i32 : i32 to vector<16x16xi32>
    %25 = arith.cmpi eq, %7, %24 : vector<16x16xi32>
    %26 = arith.select %25, %16, %14 : vector<16x16xi1>, vector<16x16xf32>
    %27 = vector.extract_strided_slice %4 {offsets = [32, 0], sizes = [16, 16], strides = [1, 1]} : vector<64x16xbf16> to vector<16x16xbf16>
    %cst_13 = arith.constant dense<0.000000e+00> : vector<16x16xf32>
    %28 = tpu.matmul %5, %27, %cst_13 {dimension_numbers = #tpu.dot_dimension_numbers<[1], [0], [0], [1], [0, 0, 1, 1], [], []>} : vector<16x16xbf16>, vector<16x16xbf16>, vector<16x16xf32> -> vector<16x16xf32>
    %29 = arith.maximumf %17, %28 : vector<16x16xf32>
    %30 = arith.subf %17, %29 : vector<16x16xf32>
    %31 = math.exp %30 : vector<16x16xf32>
    %32 = arith.mulf %23, %31 : vector<16x16xf32>
    %33 = arith.subf %28, %29 : vector<16x16xf32>
    %34 = math.exp %33 : vector<16x16xf32>
    %35 = arith.addf %32, %34 : vector<16x16xf32>
    %c2_i32 = arith.constant 2 : i32
    %36 = vector.broadcast %c2_i32 : i32 to vector<16x16xi32>
    %37 = arith.cmpi eq, %7, %36 : vector<16x16xi32>
    %38 = arith.select %37, %28, %26 : vector<16x16xi1>, vector<16x16xf32>
    %39 = vector.extract_strided_slice %4 {offsets = [48, 0], sizes = [16, 16], strides = [1, 1]} : vector<64x16xbf16> to vector<16x16xbf16>
    %cst_14 = arith.constant dense<0.000000e+00> : vector<16x16xf32>
    %40 = tpu.matmul %5, %39, %cst_14 {dimension_numbers = #tpu.dot_dimension_numbers<[1], [0], [0], [1], [0, 0, 1, 1], [], []>} : vector<16x16xbf16>, vector<16x16xbf16>, vector<16x16xf32> -> vector<16x16xf32>
    %41 = arith.maximumf %29, %40 : vector<16x16xf32>
    %42 = arith.subf %29, %41 : vector<16x16xf32>
    %43 = math.exp %42 : vector<16x16xf32>
    %44 = arith.mulf %35, %43 : vector<16x16xf32>
    %45 = arith.subf %40, %41 : vector<16x16xf32>
    %46 = math.exp %45 : vector<16x16xf32>
    %47 = arith.addf %44, %46 : vector<16x16xf32>
    %c3_i32 = arith.constant 3 : i32
    %48 = vector.broadcast %c3_i32 : i32 to vector<16x16xi32>
    %49 = arith.cmpi eq, %7, %48 : vector<16x16xi32>
    %50 = arith.select %49, %40, %38 : vector<16x16xi1>, vector<16x16xf32>
    %51 = math.log %47 : vector<16x16xf32>
    %52 = arith.addf %41, %51 : vector<16x16xf32>
    %53 = arith.subf %52, %50 : vector<16x16xf32>
    %54 = vector.extract_strided_slice %53 {offsets = [0, 0], sizes = [8, 16], strides = [1, 1]} : vector<16x16xf32> to vector<8x16xf32>
    %55 = vector.extract_strided_slice %53 {offsets = [8, 0], sizes = [8, 16], strides = [1, 1]} : vector<16x16xf32> to vector<8x16xf32>
    %56 = arith.addf %54, %55 : vector<8x16xf32>
    %c0_15 = arith.constant 0 : index
    %c0_16 = arith.constant 0 : index
    %c0_17 = arith.constant 0 : index
    %c0_18 = arith.constant 0 : index
    %57 = vector.load %arg6[%c0_15, %c0_16, %c0_17, %c0_18] : memref<1x1x8x16xf32, #tpu.memory_space<vmem>>, vector<1x1x8x16xf32>
    %58 = vector.shape_cast %57 : vector<1x1x8x16xf32> to vector<8x16xf32>
    %59 = vector.shape_cast %56 : vector<8x16xf32> to vector<1x1x8x16xf32>
    tpu.vector_store %arg6[%c0_15, %c0_16, %c0_17, %c0_18], %59 {strides = array<i32>} : memref<1x1x8x16xf32, #tpu.memory_space<vmem>>, vector<1x1x8x16xf32>,
    return
  }
  func.func @transform_0(%arg0: i32, %arg1: i32) -> (i32, i32, i32) {
    %c0_i32 = arith.constant 0 : i32
    %c0_i32_0 = arith.constant 0 : i32
    %c0_i32_1 = arith.constant 0 : i32
    return %arg0, %c0_i32, %c0_i32_0 : i32, i32, i32
  }
  func.func @transform_1(%arg0: i32, %arg1: i32) -> (i32, i32) {
    %c0_i32 = arith.constant 0 : i32
    %c0_i32_0 = arith.constant 0 : i32
    return %arg1, %c0_i32 : i32, i32
  }
  func.func @transform_2(%arg0: i32, %arg1: i32) -> (i32, i32) {
    %c0_i32 = arith.constant 0 : i32
    %c0_i32_0 = arith.constant 0 : i32
    %c0_i32_1 = arith.constant 0 : i32
    return %c0_i32, %c0_i32_0 : i32, i32
  }
  func.func @transform_3(%arg0: i32, %arg1: i32) -> (i32, i32, i32) {
    %c0_i32 = arith.constant 0 : i32
    %c0_i32_0 = arith.constant 0 : i32
    return %arg0, %arg1, %c0_i32 : i32, i32, i32
  }
  func.func @transform_4(%arg0: i32, %arg1: i32) -> (i32, i32, i32, i32) {
    %c0_i32 = arith.constant 0 : i32
    %c0_i32_0 = arith.constant 0 : i32
    %c0_i32_1 = arith.constant 0 : i32
    return %arg0, %arg1, %c0_i32, %c0_i32_0 : i32, i32, i32, i32
  }
}

</mosaic_0001>

<llo_original>
// kernel: tpu_custom_call.1
$region0: #{tpu_custom_call.1}
  #allocation0 [shape = 'u32[]', space=smem, size = 0x4, offset = 0x4, fixed_abs, tag = 'smem constant byte address 0x4 - core index']
  #allocation1 [shape = 'u32[144,128]{1,0:T(1,128)}', space=vmem, size = 0x12000, scoped, tag = 'internal scratch']
  %s0 = inlined_call_operand.vmem [shape: bf16[2,64,8], index: 0, kind: input, shape index: {}]
  %s1 = inlined_call_operand.vmem [shape: bf16[16,16], index: 1, kind: input, shape index: {}]
  %s2 = inlined_call_operand.vmem [shape: bf16[8,16], index: 2, kind: input, shape index: {}]
  %s3 = inlined_call_operand.vmem [shape: s32[2,16,16], index: 3, kind: input, shape index: {}]
  %s4 = inlined_call_operand.hbm [shape: f32[2,1,8,16], index: 4, kind: output, shape index: {}]
  %s5 = sld [smem:[#allocation0]]
  $region49: #{tpu_custom_call.1} parent=0
    _
  %s7 = ssub.s32 1, %s5
  %s8 = scalar_select 0, %s7, %s5
  $region1: #{tpu_custom_call.1} parent=0
    #allocation2 [shape = 'u8[8192]{0}', space=vmem, size = 0x2000, scoped, tag = 'output window, operand 0']
    #allocation3 [shape = 's32[2]{0}', space=sflag, size = 0x8, scoped, tag = 'scoped memory for tpu_custom_call.1']
    %9 = vsyncpa [#allocation3], 0
    %s10 = scalar_lea.sflag [#allocation3], 1
    %11 = vsyncpa %s10, 0
    loop: start=0, step=1, limit=4
    $region2: #{tpu_custom_call.1} parent=1 // loop_pre_header
      _
    $region3: #{tpu_custom_call.1} parent=1 // loop_header
      %s13 = sphi 0, %s17
      %p14 = scmp.ge.s32.totalorder %s13, 4
      %s20 = sphi 0, %s32
      %s21 = sphi 0, %s28
      %s22 = sphi 0, %s20
      %s23 = sphi 0, %s21
      %s24 = sphi 0, %s22
      %s25 = sphi 0, %s23
      %s35 = sphi 0, %s37
      %s38 = sphi 0, %s35
      %s39 = sphi 0, %s38
      %s55 = sphi 0, %s39
      %s61 = sphi 0, %s63
      %s64 = sphi 0, %s61
      %s65 = sphi 0, %s64
      %s81 = sphi 0, %s65
      %s85 = sphi 0, %s85
      %s87 = sphi 0, %s85
      %s88 = sphi 0, %s87
      %s102 = sphi 0, %s88
      %s110 = sphi 0, %s112
      %s113 = sphi 0, %s110
      %s114 = sphi 0, %s113
      %s130 = sphi 0, %s114
      %s138 = sphi 0, %s140
      %s141 = sphi 0, %s138
      %s142 = sphi 0, %s141
      %s158 = sphi 0, %s142
    $region4: #{tpu_custom_call.1} parent=1 // loop_header_branch
      %16 = sbr.rel (%p14) target = $region8
    $region5: #{tpu_custom_call.1} parent=1 // loop_body
      %s18 = ssub.s32 %s13, 1
      %s19 = ssub.s32 %s13, 2
      %s26 = sadd.s32 1, %s21
      %p27 = scmp.ge.s32.totalorder %s26, 1
      %s28 = scalar_select %p27, 0, %s26
      %s29 = sadd.s32 1, %s20
      %s30 = scalar_select %p27, %s29, %s20
      %p31 = scmp.ge.s32.totalorder %s30, 2
      %s32 = scalar_select %p31, 0, %s30
      %s33 = ssub.s32 %s20, %s32
      %p34 = scmp.eq.s32.totalorder %s33, 0
      %s36 = sadd.s32 %s35, 1
      %s37 = scalar_select %p34, %s35, %s36
      %p40 = pneg %p34
      %p41 = scmp.eq.s32.totalorder %s13, 1
      %p42 = por %p40, %p41
      %p43 = scmp.ne.s32.totalorder %s35, %s38
      %p44 = scmp.eq.s32.totalorder %s13, 0
      %p45 = por %p43, %p44
      %p46 = scmp.ne.s32.totalorder %s35, %s38
      %p47 = scmp.eq.s32.totalorder %s18, 1
      %p48 = por %p46, %p47
      %p49 = scmp.ne.s32.totalorder %s38, %s39
      %p50 = scmp.eq.s32.totalorder %s18, 0
      %p51 = por %p49, %p50
      %p52 = scmp.ne.s32.totalorder %s38, %s39
      %p53 = scmp.eq.s32.totalorder %s19, 1
      %p54 = por %p52, %p53
      %p56 = scmp.ne.s32.totalorder %s39, %s55
      %p57 = scmp.eq.s32.totalorder %s19, 0
      %p58 = por %p56, %p57
      %s59 = ssub.s32 %s21, %s28
      %p60 = scmp.eq.s32.totalorder %s59, 0
      %s62 = sadd.s32 %s61, 1
      %s63 = scalar_select %p60, %s61, %s62
      %p66 = pneg %p60
      %p67 = scmp.eq.s32.totalorder %s13, 1
      %p68 = por %p66, %p67
      %p69 = scmp.ne.s32.totalorder %s61, %s64
      %p70 = scmp.eq.s32.totalorder %s13, 0
      %p71 = por %p69, %p70
      %p72 = scmp.ne.s32.totalorder %s61, %s64
      %p73 = scmp.eq.s32.totalorder %s18, 1
      %p74 = por %p72, %p73
      %p75 = scmp.ne.s32.totalorder %s64, %s65
      %p76 = scmp.eq.s32.totalorder %s18, 0
      %p77 = por %p75, %p76
      %p78 = scmp.ne.s32.totalorder %s64, %s65
      %p79 = scmp.eq.s32.totalorder %s19, 1
      %p80 = por %p78, %p79
      %p82 = scmp.ne.s32.totalorder %s65, %s81
      %p83 = scmp.eq.s32.totalorder %s19, 0
      %p84 = por %p82, %p83
      %s86 = sadd.s32 %s85, 1
      %p89 = scmp.eq.s32.totalorder %s13, 1
      %p90 = scmp.ne.s32.totalorder %s85, %s87
      %p91 = scmp.eq.s32.totalorder %s13, 0
      %p92 = por %p90, %p91
      %p93 = scmp.ne.s32.totalorder %s85, %s87
      %p94 = scmp.eq.s32.totalorder %s18, 1
      %p95 = por %p93, %p94
      %p96 = scmp.ne.s32.totalorder %s87, %s88
      %p97 = scmp.eq.s32.totalorder %s18, 0
      %p98 = por %p96, %p97
      %p99 = scmp.ne.s32.totalorder %s87, %s88
      %p100 = scmp.eq.s32.totalorder %s19, 1
      %p101 = por %p99, %p100
      %p103 = scmp.ne.s32.totalorder %s88, %s102
      %p104 = scmp.eq.s32.totalorder %s19, 0
      %p105 = por %p103, %p104
      %s106 = ssub.s32 %s20, %s32
      %s107 = ssub.s32 %s21, %s28
      %s108 = sor.u32 %s106, %s107
      %p109 = scmp.eq.s32.totalorder %s108, 0
      %s111 = sadd.s32 %s110, 1
      %s112 = scalar_select %p109, %s110, %s111
      %p115 = pneg %p109
      %p116 = scmp.eq.s32.totalorder %s13, 1
      %p117 = por %p115, %p116
      %p118 = scmp.ne.s32.totalorder %s110, %s113
      %p119 = scmp.eq.s32.totalorder %s13, 0
      %p120 = por %p118, %p119
      %p121 = scmp.ne.s32.totalorder %s110, %s113
      %p122 = scmp.eq.s32.totalorder %s18, 1
      %p123 = por %p121, %p122
      %p124 = scmp.ne.s32.totalorder %s113, %s114
      %p125 = scmp.eq.s32.totalorder %s18, 0
      %p126 = por %p124, %p125
      %p127 = scmp.ne.s32.totalorder %s113, %s114
      %p128 = scmp.eq.s32.totalorder %s19, 1
      %p129 = por %p127, %p128
      %p131 = scmp.ne.s32.totalorder %s114, %s130
      %p132 = scmp.eq.s32.totalorder %s19, 0
      %p133 = por %p131, %p132
      %s134 = ssub.s32 %s20, %s32
      %s135 = ssub.s32 %s21, %s28
      %s136 = sor.u32 %s134, %s135
      %p137 = scmp.eq.s32.totalorder %s136, 0
      %s139 = sadd.s32 %s138, 1
      %s140 = scalar_select %p137, %s138, %s139
      %p143 = pneg %p137
      %p144 = scmp.eq.s32.totalorder %s13, 1
      %p145 = por %p143, %p144
      %p146 = scmp.ne.s32.totalorder %s138, %s141
      %p147 = scmp.eq.s32.totalorder %s13, 0
      %p148 = por %p146, %p147
      %p149 = scmp.ne.s32.totalorder %s138, %s141
      %p150 = scmp.eq.s32.totalorder %s18, 1
      %p151 = por %p149, %p150
      %p152 = scmp.ne.s32.totalorder %s141, %s142
      %p153 = scmp.eq.s32.totalorder %s18, 0
      %p154 = por %p152, %p153
      %p155 = scmp.ne.s32.totalorder %s141, %s142
      %p156 = scmp.eq.s32.totalorder %s19, 1
      %p157 = por %p155, %p156
      %p159 = scmp.ne.s32.totalorder %s142, %s158
      %p160 = scmp.eq.s32.totalorder %s19, 0
      %p161 = por %p159, %p160
      %p162 = scmp.le.s32.totalorder 1, %s13
      %p163 = scmp.lt.s32.totalorder %s13, 3
      %p164 = pnand %p162, %p163
      %p165 = pneg %p164
      // Predicated region
      $region9: #{tpu_custom_call.1} parent=5 // pred_check
        _
      $region10: #{tpu_custom_call.1} parent=5 // pred_check_branch
        %167 = sbr.rel (%p164) target = $region12
      $region11: #{tpu_custom_call.1} parent=5 // pred_region
        %s168 = ssub.s32 %s13, 1
        // Predicated region
        $region13: #{tpu_custom_call.1} parent=11 // pred_check
          %p169 = pneg %p77
        $region14: #{tpu_custom_call.1} parent=11 // pred_check_branch
          %171 = sbr.rel (%p169) target = $region16
        $region15: #{tpu_custom_call.1} parent=11 // pred_region
          %s172 = smul.u32 2, %s23
          %p173 = scmp.lt.s32.totalorder %s172, 1
          %s174 = scalar_select %p173, %s172, 1
          %s175 = smul.addr %s174, 4
          %s176 = scalar_lea.vmem %s1, %s175
          %s177 = smul.u32 2, %s23
        $region16: #{tpu_custom_call.1} parent=11 // pred_fallthru
          _
        // Predicated region
        $region17: #{tpu_custom_call.1} parent=11 // pred_check
          %p178 = pneg %p98
        $region18: #{tpu_custom_call.1} parent=11 // pred_check_branch
          %180 = sbr.rel (%p178) target = $region20
        $region19: #{tpu_custom_call.1} parent=11 // pred_region
          _
        $region20: #{tpu_custom_call.1} parent=11 // pred_fallthru
          _
      $region12: #{tpu_custom_call.1} parent=5 // pred_fallthru
        _
      %p181 = scmp.lt.s32.totalorder %s13, 2
      // Predicated region
      $region21: #{tpu_custom_call.1} parent=5 // pred_check
        %p182 = pneg %p181
      $region22: #{tpu_custom_call.1} parent=5 // pred_check_branch
        %184 = sbr.rel (%p182) target = $region24
      $region23: #{tpu_custom_call.1} parent=5 // pred_region
        // Predicated region
        $region25: #{tpu_custom_call.1} parent=23 // pred_check
          %p185 = pneg %p45
        $region26: #{tpu_custom_call.1} parent=23 // pred_check_branch
          %187 = sbr.rel (%p185) target = $region28
        $region27: #{tpu_custom_call.1} parent=23 // pred_region
          %p188 = scmp.lt.s32.totalorder %s20, 1
          %s189 = scalar_select %p188, %s20, 1
          %s190 = smul.addr %s189, 8
          %s191 = smul.addr %s190, 4
          %s192 = scalar_lea.vmem %s0, %s191
        $region28: #{tpu_custom_call.1} parent=23 // pred_fallthru
          _
        // Predicated region
        $region29: #{tpu_custom_call.1} parent=23 // pred_check
          %p193 = pneg %p120
        $region30: #{tpu_custom_call.1} parent=23 // pred_check_branch
          %195 = sbr.rel (%p193) target = $region32
        $region31: #{tpu_custom_call.1} parent=23 // pred_region
          %s196 = smul.u32 2, %s21
          %p197 = scmp.lt.s32.totalorder %s20, 1
          %s198 = scalar_select %p197, %s20, 1
          %p199 = scmp.lt.s32.totalorder %s196, 1
          %s200 = scalar_select %p199, %s196, 1
          %s201 = smul.addr %s198, 2
          %s202 = sadd.s32 %s200, %s201
          %s203 = smul.addr %s202, 8
          %s204 = scalar_lea.vmem %s3, %s203
          %s205 = smul.u32 2, %s21
        $region32: #{tpu_custom_call.1} parent=23 // pred_fallthru
          _
      $region24: #{tpu_custom_call.1} parent=5 // pred_fallthru
        _
      %p206 = scmp.le.s32.totalorder 1, %s13
      %p207 = scmp.lt.s32.totalorder %s13, 3
      %p208 = pnand %p206, %p207
      %p209 = pneg %p208
      // Predicated region
      $region33: #{tpu_custom_call.1} parent=5 // pred_check
        _
      $region34: #{tpu_custom_call.1} parent=5 // pred_check_branch
        %211 = sbr.rel (%p208) target = $region36
      $region35: #{tpu_custom_call.1} parent=5 // pred_region
        %s212 = ssub.s32 %s13, 1
        %p213 = scmp.lt.s32.totalorder %s22, 1
        %s214 = scalar_select %p213, %s22, 1
        %s215 = smul.addr %s214, 8
        %s216 = smul.addr %s215, 4
        %s217 = scalar_lea.vmem %s0, %s216
        %p218 = pneg %p51
        %p219 = pneg %p48
        %s220 = smul.u32 2, %s23
        %p221 = scmp.lt.s32.totalorder %s220, 1
        %s222 = scalar_select %p221, %s220, 1
        %s223 = smul.addr %s222, 4
        %s224 = scalar_lea.vmem %s1, %s223
        %p225 = pneg %p77
        %p226 = pneg %p74
        %p227 = pneg %p98
        %p228 = pneg %p95
        %s229 = smul.u32 2, %s23
        %p230 = scmp.lt.s32.totalorder %s22, 1
        %s231 = scalar_select %p230, %s22, 1
        %p232 = scmp.lt.s32.totalorder %s229, 1
        %s233 = scalar_select %p232, %s229, 1
        %s234 = smul.addr %s231, 2
        %s235 = sadd.s32 %s233, %s234
        %s236 = smul.addr %s235, 8
        %s237 = scalar_lea.vmem %s3, %s236
        %p238 = pneg %p126
        %p239 = pneg %p123
        %p240 = pneg %p154
        %p241 = pneg %p151
        %s242 = sand.u32 %s141, 1
        %s243 = scalar_lea.sflag [#allocation3], %s242
        %s244 = sand.u32 %s141, 1
        %s245 = smul.addr %s244, 8
        %s246 = scalar_lea.vmem [#allocation2], %s245
        %p247 = scmp.lt.s32.totalorder %s22, 1
        %s248 = scalar_select %p247, %s22, 1
        %s249 = smul.addr %s248, 8
        %s250 = smul.addr %s249, 4
        %s251 = scalar_lea.vmem %s0, %s250
        %s252 = smul.u32 2, %s23
        %p253 = scmp.lt.s32.totalorder %s252, 1
        %s254 = scalar_select %p253, %s252, 1
        %s255 = smul.addr %s254, 4
        %s256 = scalar_lea.vmem %s1, %s255
        %s257 = smul.u32 2, %s23
        %s258 = smul.u32 2, %s23
        %p259 = scmp.lt.s32.totalorder %s22, 1
        %s260 = scalar_select %p259, %s22, 1
        %p261 = scmp.lt.s32.totalorder %s258, 1
        %s262 = scalar_select %p261, %s258, 1
        %s263 = smul.addr %s260, 2
        %s264 = sadd.s32 %s262, %s263
        %s265 = smul.addr %s264, 8
        %s266 = scalar_lea.vmem %s3, %s265
        %s267 = smul.u32 2, %s23
        %v269 = vld [vmem:[%s251] sm:$0xf]
        %v270 = vld [vmem:[%s251 + $0x4] sm:$0xf]
        %v271 = vld [vmem:[%s251 + $0x8] sm:$0xf]
        %v272 = vld [vmem:[%s251 + $0xc] sm:$0xf]
        %v273 = vld [vmem:[%s251 + $0x10] sm:$0xf]
        %v274 = vld [vmem:[%s251 + $0x14] sm:$0xf]
        %v275 = vld [vmem:[%s251 + $0x18] sm:$0xf]
        %v276 = vld [vmem:[%s251 + $0x1c] sm:$0xf]
        %v277 = vld [vmem:[%s2] sm:$0xf]
        %v286 = vunpack.c.l.b16 %v269
        %v287 = vunpack.c.l.b16 %v270
        %v288 = vunpack.c.l.b16 %v271
        %v289 = vunpack.c.l.b16 %v272
        %v290 = vunpack.c.l.b16 %v273
        %v291 = vunpack.c.l.b16 %v274
        %v292 = vunpack.c.l.b16 %v275
        %v293 = vunpack.c.l.b16 %v276
        %v294 = vpack.c.b16 %v287, %v286
        %v295 = vpack.c.b16 %v289, %v288
        %v296 = vpack.c.b16 %v291, %v290
        %v297 = vpack.c.b16 %v293, %v292
        %vm298 = vcmask 64512
        %v300 = vsel %vm298, %v294, 0
        %v303 = vsel %vm298, %v295, 0
        %v306 = vsel %vm298, %v296, 0
        %v309 = vsel %vm298, %v297, 0
        %vm311 = vcmask 1043456
        %v313 = vsel %vm311, %v277, 0
        %315 = vmatprep.subr.bf16.mxu0 0
        %316 = vmatpush1.bf16.msra.mxu0 0
        %317 = vmatprep.subr.bf16.mxu0 0
        %318 = vmatpush1.bf16.msra.mxu0 0
        %319 = vmatprep.subr.bf16.mxu0 0
        %320 = vmatpush1.bf16.msra.mxu0 0
        %321 = vmatprep.subr.bf16.mxu0 0
        %322 = vmatpush1.bf16.msra.mxu0 0
        %323 = vmatprep.subr.bf16.mxu0 0
        %324 = vmatpush1.bf16.msra.mxu0 0
        %325 = vmatprep.subr.bf16.mxu0 0
        %326 = vmatpush1.bf16.msra.mxu0 0
        %327 = vmatprep.subr.bf16.mxu0 0
        %328 = vmatpush1.bf16.msra.mxu0 0
        %329 = vmatprep.subr.bf16.mxu0 0
        %330 = vmatpush1.bf16.msra.mxu0 %v313
        %331 = vmatprep.subr.bf16.mxu0 0
        %332 = vmatpush2.bf16.msra.mxu0 0
        %333 = vmatprep.subr.bf16.mxu0 0
        %334 = vmatpush2.bf16.msra.mxu0 0
        %335 = vmatprep.subr.bf16.mxu0 0
        %336 = vmatpush2.bf16.msra.mxu0 0
        %337 = vmatprep.subr.bf16.mxu0 0
        %338 = vmatpush2.bf16.msra.mxu0 0
        %339 = vmatprep.subr.bf16.mxu0 0
        %340 = vmatpush2.bf16.msra.mxu0 0
        %341 = vmatprep.subr.bf16.mxu0 0
        %342 = vmatpush2.bf16.msra.mxu0 0
        %343 = vmatprep.subr.bf16.mxu0 0
        %344 = vmatpush2.bf16.msra.mxu0 0
        %345 = vmatprep.subr.bf16.mxu0 0
        %346 = vmatpush2.bf16.msra.mxu0 0
        %347 = vmatprep.mubr.bf16.mxu0 0
        %348 = vmatmul.mubr.bf16.gmra.mxu0 %v300
        %v349 = vpop.f32.mrf.mxu0
        %v350 = vadd.f32 0.0, %v349
        %v351 = vpop.f32.mrf.mxu0
        %v352 = vpop.f32.mrf.mxu0
        %v353 = vadd.f32 0.0, %v352
        %v354 = vpop.f32.mrf.mxu0
        %355 = vmatprep.mubr.bf16.mxu0 0
        %356 = vmatmul.mubr.bf16.gmra.mxu0 %v303
        %v357 = vpop.f32.mrf.mxu0
        %v358 = vadd.f32 0.0, %v357
        %v359 = vpop.f32.mrf.mxu0
        %v360 = vpop.f32.mrf.mxu0
        %v361 = vadd.f32 0.0, %v360
        %v362 = vpop.f32.mrf.mxu0
        %363 = vmatprep.mubr.bf16.mxu0 0
        %364 = vmatmul.mubr.bf16.gmra.mxu0 %v306
        %v365 = vpop.f32.mrf.mxu0
        %v366 = vadd.f32 0.0, %v365
        %v367 = vpop.f32.mrf.mxu0
        %v368 = vpop.f32.mrf.mxu0
        %v369 = vadd.f32 0.0, %v368
        %v370 = vpop.f32.mrf.mxu0
        %371 = vmatprep.mubr.bf16.mxu0 0
        %372 = vmatmul.mubr.bf16.gmra.mxu0 %v309
        %v373 = vpop.f32.mrf.mxu0
        %v374 = vadd.f32 0.0, %v373
        %v375 = vpop.f32.mrf.mxu0
        %v376 = vpop.f32.mrf.mxu0
        %v377 = vadd.f32 0.0, %v376
        %v378 = vpop.f32.mrf.mxu0
        %379 = vdwg.mxu0
        %v380 = vpack.c.bf16 %v353, %v350
        %v381 = vpack.c.bf16 %v361, %v358
        %v382 = vpack.c.bf16 %v369, %v366
        %v383 = vpack.c.bf16 %v377, %v374
        %v384 = vld [vmem:[%s256] sm:$0xf]
        %v385 = vld [vmem:[%s256 + $0x4] sm:$0xf]
        %v386 = vld [vmem:[%s266] sm:$0xff]
        %v387 = vld [vmem:[%s266 + $0x8] sm:$0xff]
        %v390 = vunpack.c.l.b16 %v384
        %v391 = vunpack.c.l.b16 %v385
        %v392 = vpack.c.b16 %v391, %v390
        %vm393 = vcmask 130048
        %v395 = vsel %vm393, %v392, 0
        %397 = vmatprep.subr.bf16.mxu0 0
        %398 = vmatpush1.bf16.msra.mxu0 0
        %399 = vmatprep.subr.bf16.mxu0 0
        %400 = vmatpush1.bf16.msra.mxu0 0
        %401 = vmatprep.subr.bf16.mxu0 0
        %402 = vmatpush1.bf16.msra.mxu0 0
        %403 = vmatprep.subr.bf16.mxu0 0
        %404 = vmatpush1.bf16.msra.mxu0 0
        %405 = vmatprep.subr.bf16.mxu0 0
        %406 = vmatpush1.bf16.msra.mxu0 0
        %407 = vmatprep.subr.bf16.mxu0 0
        %408 = vmatpush1.bf16.msra.mxu0 0
        %409 = vmatprep.subr.bf16.mxu0 0
        %410 = vmatpush1.bf16.msra.mxu0 0
        %411 = vmatprep.subr.bf16.mxu0 0
        %412 = vmatpush1.bf16.msra.mxu0 %v380
        %413 = vmatprep.subr.bf16.mxu0 0
        %414 = vmatpush2.bf16.msra.mxu0 0
        %415 = vmatprep.subr.bf16.mxu0 0
        %416 = vmatpush2.bf16.msra.mxu0 0
        %417 = vmatprep.subr.bf16.mxu0 0
        %418 = vmatpush2.bf16.msra.mxu0 0
        %419 = vmatprep.subr.bf16.mxu0 0
        %420 = vmatpush2.bf16.msra.mxu0 0
        %421 = vmatprep.subr.bf16.mxu0 0
        %422 = vmatpush2.bf16.msra.mxu0 0
        %423 = vmatprep.subr.bf16.mxu0 0
        %424 = vmatpush2.bf16.msra.mxu0 0
        %425 = vmatprep.subr.bf16.mxu0 0
        %426 = vmatpush2.bf16.msra.mxu0 0
        %427 = vmatprep.subr.bf16.mxu0 0
        %428 = vmatpush2.bf16.msra.mxu0 0
        %429 = vmatprep.mubr.bf16.mxu0 0
        %430 = vmatmul.mubr.bf16.gmra.mxu0 %v395
        %v431 = vpop.f32.mrf.mxu0
        %v432 = vadd.f32 0.0, %v431
        %v433 = vpop.f32.mrf.mxu0
        %v434 = vpop.f32.mrf.mxu0
        %v435 = vadd.f32 0.0, %v434
        %v436 = vpop.f32.mrf.mxu0
        %437 = vdwg.mxu0
        %vm438 = vcmp.eq.s32.totalorder %v386, 0
        %vm439 = vcmp.eq.s32.totalorder %v387, 0
        %v440 = vsel %vm438, %v432, 0.0
        %v441 = vsel %vm439, %v435, 0.0
        %442 = vmatprep.subr.bf16.mxu0 0
        %443 = vmatpush1.bf16.msra.mxu0 0
        %444 = vmatprep.subr.bf16.mxu0 0
        %445 = vmatpush1.bf16.msra.mxu0 0
        %446 = vmatprep.subr.bf16.mxu0 0
        %447 = vmatpush1.bf16.msra.mxu0 0
        %448 = vmatprep.subr.bf16.mxu0 0
        %449 = vmatpush1.bf16.msra.mxu0 0
        %450 = vmatprep.subr.bf16.mxu0 0
        %451 = vmatpush1.bf16.msra.mxu0 0
        %452 = vmatprep.subr.bf16.mxu0 0
        %453 = vmatpush1.bf16.msra.mxu0 0
        %454 = vmatprep.subr.bf16.mxu0 0
        %455 = vmatpush1.bf16.msra.mxu0 0
        %456 = vmatprep.subr.bf16.mxu0 0
        %457 = vmatpush1.bf16.msra.mxu0 %v381
        %458 = vmatprep.subr.bf16.mxu0 0
        %459 = vmatpush2.bf16.msra.mxu0 0
        %460 = vmatprep.subr.bf16.mxu0 0
        %461 = vmatpush2.bf16.msra.mxu0 0
        %462 = vmatprep.subr.bf16.mxu0 0
        %463 = vmatpush2.bf16.msra.mxu0 0
        %464 = vmatprep.subr.bf16.mxu0 0
        %465 = vmatpush2.bf16.msra.mxu0 0
        %466 = vmatprep.subr.bf16.mxu0 0
        %467 = vmatpush2.bf16.msra.mxu0 0
        %468 = vmatprep.subr.bf16.mxu0 0
        %469 = vmatpush2.bf16.msra.mxu0 0
        %470 = vmatprep.subr.bf16.mxu0 0
        %471 = vmatpush2.bf16.msra.mxu0 0
        %472 = vmatprep.subr.bf16.mxu0 0
        %473 = vmatpush2.bf16.msra.mxu0 0
        %474 = vmatprep.mubr.bf16.mxu0 0
        %475 = vmatmul.mubr.bf16.gmra.mxu0 %v395
        %v476 = vpop.f32.mrf.mxu0
        %v477 = vadd.f32 0.0, %v476
        %v478 = vpop.f32.mrf.mxu0
        %v479 = vpop.f32.mrf.mxu0
        %v480 = vadd.f32 0.0, %v479
        %v481 = vpop.f32.mrf.mxu0
        %482 = vdwg.mxu0
        %v483 = vmax.f32 %v432, %v477
        %v484 = vmax.f32 %v435, %v480
        %v485 = vsub.f32 %v432, %v483
        %v486 = vsub.f32 %v435, %v484
        %v487 = vmul.f32 %v485, 1.442695
        %v488 = vpow.pop %v487
        %v489 = vmul.f32 %v486, 1.442695
        %v490 = vpow.pop %v489
        %v491 = vsub.f32 %v477, %v483
        %v492 = vsub.f32 %v480, %v484
        %v493 = vmul.f32 %v491, 1.442695
        %v494 = vpow.pop %v493
        %v495 = vmul.f32 %v492, 1.442695
        %v496 = vpow.pop %v495
        %v497 = vadd.f32 %v488, %v494
        %v498 = vadd.f32 %v490, %v496
        %vm499 = vcmp.eq.s32.totalorder %v386, 1
        %vm500 = vcmp.eq.s32.totalorder %v387, 1
        %v501 = vsel %vm499, %v477, %v440
        %v502 = vsel %vm500, %v480, %v441
        %503 = vmatprep.subr.bf16.mxu0 0
        %504 = vmatpush1.bf16.msra.mxu0 0
        %505 = vmatprep.subr.bf16.mxu0 0
        %506 = vmatpush1.bf16.msra.mxu0 0
        %507 = vmatprep.subr.bf16.mxu0 0
        %508 = vmatpush1.bf16.msra.mxu0 0
        %509 = vmatprep.subr.bf16.mxu0 0
        %510 = vmatpush1.bf16.msra.mxu0 0
        %511 = vmatprep.subr.bf16.mxu0 0
        %512 = vmatpush1.bf16.msra.mxu0 0
        %513 = vmatprep.subr.bf16.mxu0 0
        %514 = vmatpush1.bf16.msra.mxu0 0
        %515 = vmatprep.subr.bf16.mxu0 0
        %516 = vmatpush1.bf16.msra.mxu0 0
        %517 = vmatprep.subr.bf16.mxu0 0
        %518 = vmatpush1.bf16.msra.mxu0 %v382
        %519 = vmatprep.subr.bf16.mxu0 0
        %520 = vmatpush2.bf16.msra.mxu0 0
        %521 = vmatprep.subr.bf16.mxu0 0
        %522 = vmatpush2.bf16.msra.mxu0 0
        %523 = vmatprep.subr.bf16.mxu0 0
        %524 = vmatpush2.bf16.msra.mxu0 0
        %525 = vmatprep.subr.bf16.mxu0 0
        %526 = vmatpush2.bf16.msra.mxu0 0
        %527 = vmatprep.subr.bf16.mxu0 0
        %528 = vmatpush2.bf16.msra.mxu0 0
        %529 = vmatprep.subr.bf16.mxu0 0
        %530 = vmatpush2.bf16.msra.mxu0 0
        %531 = vmatprep.subr.bf16.mxu0 0
        %532 = vmatpush2.bf16.msra.mxu0 0
        %533 = vmatprep.subr.bf16.mxu0 0
        %534 = vmatpush2.bf16.msra.mxu0 0
        %535 = vmatprep.mubr.bf16.mxu0 0
        %536 = vmatmul.mubr.bf16.gmra.mxu0 %v395
        %v537 = vpop.f32.mrf.mxu0
        %v538 = vadd.f32 0.0, %v537
        %v539 = vpop.f32.mrf.mxu0
        %v540 = vpop.f32.mrf.mxu0
        %v541 = vadd.f32 0.0, %v540
        %v542 = vpop.f32.mrf.mxu0
        %543 = vdwg.mxu0
        %v544 = vmax.f32 %v483, %v538
        %v545 = vmax.f32 %v484, %v541
        %v546 = vsub.f32 %v483, %v544
        %v547 = vsub.f32 %v484, %v545
        %v548 = vmul.f32 %v546, 1.442695
        %v549 = vpow.pop %v548
        %v550 = vmul.f32 %v547, 1.442695
        %v551 = vpow.pop %v550
        %v552 = vmul.f32 %v497, %v549
        %v553 = vmul.f32 %v498, %v551
        %v554 = vsub.f32 %v538, %v544
        %v555 = vsub.f32 %v541, %v545
        %v556 = vmul.f32 %v554, 1.442695
        %v557 = vpow.pop %v556
        %v558 = vmul.f32 %v555, 1.442695
        %v559 = vpow.pop %v558
        %v560 = vadd.f32 %v552, %v557
        %v561 = vadd.f32 %v553, %v559
        %vm562 = vcmp.eq.s32.totalorder %v386, 2
        %vm563 = vcmp.eq.s32.totalorder %v387, 2
        %v564 = vsel %vm562, %v538, %v501
        %v565 = vsel %vm563, %v541, %v502
        %566 = vmatprep.subr.bf16.mxu0 0
        %567 = vmatpush1.bf16.msra.mxu0 0
        %568 = vmatprep.subr.bf16.mxu0 0
        %569 = vmatpush1.bf16.msra.mxu0 0
        %570 = vmatprep.subr.bf16.mxu0 0
        %571 = vmatpush1.bf16.msra.mxu0 0
        %572 = vmatprep.subr.bf16.mxu0 0
        %573 = vmatpush1.bf16.msra.mxu0 0
        %574 = vmatprep.subr.bf16.mxu0 0
        %575 = vmatpush1.bf16.msra.mxu0 0
        %576 = vmatprep.subr.bf16.mxu0 0
        %577 = vmatpush1.bf16.msra.mxu0 0
        %578 = vmatprep.subr.bf16.mxu0 0
        %579 = vmatpush1.bf16.msra.mxu0 0
        %580 = vmatprep.subr.bf16.mxu0 0
        %581 = vmatpush1.bf16.msra.mxu0 %v383
        %582 = vmatprep.subr.bf16.mxu0 0
        %583 = vmatpush2.bf16.msra.mxu0 0
        %584 = vmatprep.subr.bf16.mxu0 0
        %585 = vmatpush2.bf16.msra.mxu0 0
        %586 = vmatprep.subr.bf16.mxu0 0
        %587 = vmatpush2.bf16.msra.mxu0 0
        %588 = vmatprep.subr.bf16.mxu0 0
        %589 = vmatpush2.bf16.msra.mxu0 0
        %590 = vmatprep.subr.bf16.mxu0 0
        %591 = vmatpush2.bf16.msra.mxu0 0
        %592 = vmatprep.subr.bf16.mxu0 0
        %593 = vmatpush2.bf16.msra.mxu0 0
        %594 = vmatprep.subr.bf16.mxu0 0
        %595 = vmatpush2.bf16.msra.mxu0 0
        %596 = vmatprep.subr.bf16.mxu0 0
        %597 = vmatpush2.bf16.msra.mxu0 0
        %598 = vmatprep.mubr.bf16.mxu0 0
        %599 = vmatmul.mubr.bf16.gmra.mxu0 %v395
        %v600 = vpop.f32.mrf.mxu0
        %v601 = vadd.f32 0.0, %v600
        %v602 = vpop.f32.mrf.mxu0
        %v603 = vpop.f32.mrf.mxu0
        %v604 = vadd.f32 0.0, %v603
        %v605 = vpop.f32.mrf.mxu0
        %606 = vdwg.mxu0
        %v607 = vmax.f32 %v544, %v601
        %v608 = vmax.f32 %v545, %v604
        %v609 = vsub.f32 %v544, %v607
        %v610 = vsub.f32 %v545, %v608
        %v611 = vmul.f32 %v609, 1.442695
        %v612 = vpow.pop %v611
        %v613 = vmul.f32 %v610, 1.442695
        %v614 = vpow.pop %v613
        %v615 = vmul.f32 %v560, %v612
        %v616 = vmul.f32 %v561, %v614
        %v617 = vsub.f32 %v601, %v607
        %v618 = vsub.f32 %v604, %v608
        %v619 = vmul.f32 %v617, 1.442695
        %v620 = vpow.pop %v619
        %v621 = vmul.f32 %v618, 1.442695
        %v622 = vpow.pop %v621
        %v623 = vadd.f32 %v615, %v620
        %v624 = vadd.f32 %v616, %v622
        %vm625 = vcmp.eq.s32.totalorder %v386, 3
        %vm626 = vcmp.eq.s32.totalorder %v387, 3
        %v627 = vsel %vm625, %v601, %v564
        %v628 = vsel %vm626, %v604, %v565
        %v629 = vlog2.pop %v623
        %v630 = vmul.f32 %v629, 0.6931472
        %v631 = vlog2.pop %v624
        %v632 = vmul.f32 %v631, 0.6931472
        %v633 = vadd.f32 %v607, %v630
        %v634 = vadd.f32 %v608, %v632
        %v635 = vsub.f32 %v633, %v627
        %v636 = vsub.f32 %v634, %v628
        %v637 = vadd.f32 %v635, %v636
        %638 = vst.msk [vmem:[%s246] sm:$0xff] %vm393, %v637
        %s639 = sand.u32 %s141, 1
        %s640 = scalar_lea.sflag [#allocation3], %s639
        %s641 = sand.u32 %s141, 1
        %s642 = smul.addr %s641, 8
        %s643 = scalar_lea.vmem [#allocation2], %s642
        // Predicated region
        $region37: #{tpu_custom_call.1} parent=35 // pred_check
          %p644 = pneg %p151
        $region38: #{tpu_custom_call.1} parent=35 // pred_check_branch
          %646 = sbr.rel (%p644) target = $region40
        $region39: #{tpu_custom_call.1} parent=35 // pred_region
          %s648 = ssub.s32 128, 128
          %649 = vsyncadd %s640, %s648
          %s650 = sadd.s32 %s23, %s22
          %s651 = smul.addr %s650, 128
          %s652 = scalar_lea.hbm %s4, %s651
          %s654 = sshll.u32 %s643, 4
          %s655 = int_to_ptr.vmem [resolvable:$true] %s654
          %657 = dma.vmem_to_hbm [thread:$0]  %s655, 128, %s652, %s640
        $region40: #{tpu_custom_call.1} parent=35 // pred_fallthru
          _
      $region36: #{tpu_custom_call.1} parent=5 // pred_fallthru
        _
      %p658 = scmp.le.s32.totalorder 2, %s13
      // Predicated region
      $region41: #{tpu_custom_call.1} parent=5 // pred_check
        %p659 = pneg %p658
      $region42: #{tpu_custom_call.1} parent=5 // pred_check_branch
        %661 = sbr.rel (%p659) target = $region44
      $region43: #{tpu_custom_call.1} parent=5 // pred_region
        %s662 = ssub.s32 %s13, 2
        // Predicated region
        $region45: #{tpu_custom_call.1} parent=43 // pred_check
          %p663 = pneg %p157
        $region46: #{tpu_custom_call.1} parent=43 // pred_check_branch
          %665 = sbr.rel (%p663) target = $region48
        $region47: #{tpu_custom_call.1} parent=43 // pred_region
          %s666 = sand.u32 %s142, 1
          %s667 = scalar_lea.sflag [#allocation3], %s666
          %s668 = sand.u32 %s142, 1
          %s669 = smul.addr %s668, 8
          %s670 = scalar_lea.vmem [#allocation2], %s669
          %671 = dma.done %s667, 128
        $region48: #{tpu_custom_call.1} parent=43 // pred_fallthru
          _
      $region44: #{tpu_custom_call.1} parent=5 // pred_fallthru
        _
    $region6: #{tpu_custom_call.1} parent=1 // loop_footer
      %s17 = sadd.s32 1, %s13
    $region7: #{tpu_custom_call.1} parent=1 // loop_footer_branch
      %12 = sbr.rel target = $region3
    $region8: #{tpu_custom_call.1} parent=1 // loop_exit
      _
    %672 = vsyncpa [#allocation3], 1
    %s673 = scalar_lea.sflag [#allocation3], 1
    %674 = vsyncpa %s673, 1

</llo_original>
